<compile_context>
chip_gen: v6e
topology: v6e:2x2x1
jax: 0.10.0
libtpu: 0.0.40
codegen_flags: <defaults>
</compile_context>

<pallas_src>
import functools

import jax
import jax.numpy as jnp
from jax.experimental import pallas as pl
from jax.experimental.pallas import tpu as pltpu


LANE = 128
VMEM_LIMIT = 32 * 1024 * 1024  # safe on v5e/v6e (128 MiB) and v7x (64 MiB)


def _round_up(x, m):
    return (x + m - 1) // m * m


def _node_tile(n):
    """Tile size along the node axis: 256-aligned when possible, else 128-aligned."""
    n_aligned = _round_up(n, LANE)
    return 256 if n_aligned >= 256 else n_aligned


def _pad2d(x, rows, cols):
    return jnp.pad(x, ((0, rows - x.shape[0]), (0, cols - x.shape[1])))


# ----------------------------- Pallas kernels -------------------------------
def _linear_kernel(x_ref, w_ref, o_ref):
    """Row tile of X @ W (f32 matmul on MXU), stored as bf16 for the aggregation."""
    o_ref[...] = jnp.dot(
        x_ref[...], w_ref[...], preferred_element_type=jnp.float32
    ).astype(o_ref.dtype)


def _aggregate_body(a_ref, xw_ref, b_ref, ori_ref, o_ref, acc_ref, residual):
    k = pl.program_id(1)

    @pl.when(k == 0)
    def _():
        acc_ref[...] = jnp.zeros_like(acc_ref)

    # bf16 x bf16 -> f32 accumulate on the MXU.
    acc_ref[...] += jnp.dot(a_ref[...], xw_ref[...],
                            preferred_element_type=jnp.float32)

    @pl.when(k == pl.num_programs(1) - 1)
    def _():
        out = acc_ref[...] + b_ref[...]          # f32 epilogue (v5e-safe)
        if ori_ref is not None:
            out = out + jnp.float32(residual) * ori_ref[...]
        o_ref[...] = out.astype(o_ref.dtype)


def _make_aggregate_kernel(residual):
    if residual != 0.0:
        def kernel(a_ref, xw_ref, b_ref, ori_ref, o_ref, acc_ref):
            _aggregate_body(a_ref, xw_ref, b_ref, ori_ref, o_ref, acc_ref, residual)
    else:
        def kernel(a_ref, xw_ref, b_ref, o_ref, acc_ref):
            _aggregate_body(a_ref, xw_ref, b_ref, None, o_ref, acc_ref, 0.0)
    return kernel


# ----------------------------- Pallas wrappers -------------------------------
def linear_bf16(x, w, tile_m):
    """(N_pad, Fin_pad) @ (Fin_pad, Fout_pad) -> bf16 (N_pad, Fout_pad), row-tiled."""
    n, fin = x.shape
    fout = w.shape[1]
    return pl.pallas_call(
        _linear_kernel,
        out_shape=jax.ShapeDtypeStruct((n, fout), jnp.bfloat16),
        grid=(n // tile_m,),
        in_specs=[
            pl.BlockSpec((tile_m, fin), lambda i: (i, 0)),
            pl.BlockSpec((fin, fout), lambda i: (0, 0)),
        ],
        out_specs=pl.BlockSpec((tile_m, fout), lambda i: (i, 0)),
        compiler_params=pltpu.CompilerParams(
            dimension_semantics=("parallel",),
            vmem_limit_bytes=VMEM_LIMIT,
        ),
        cost_estimate=pl.CostEstimate(
            flops=2 * n * fin * fout,
            transcendentals=0,
            bytes_accessed=n * fin * 4 + fin * fout * 4 + n * fout * 2,
        ),
    )(x, w)


def aggregate(a_hat_bf16, xw_bf16, bias2d, ori, residual, tile_m, tile_k):
    """out = A_hat @ XW + b (+ residual * ori), tiled over (rows, reduction)."""
    n = a_hat_bf16.shape[0]
    f = xw_bf16.shape[1]
    grid = (n // tile_m, n // tile_k)

    in_specs = [
        pl.BlockSpec((tile_m, tile_k), lambda i, k: (i, k)),   # A_hat tile (bf16)
        pl.BlockSpec((tile_k, f), lambda i, k: (k, 0)),        # XW tile    (bf16)
        pl.BlockSpec((1, f), lambda i, k: (0, 0)),             # bias       (f32)
    ]
    inputs = [a_hat_bf16, xw_bf16, bias2d]
    bytes_accessed = a_hat_bf16.size * 2 + xw_bf16.size * 2 + bias2d.size * 4 + n * f * 4
    if residual != 0.0:
        in_specs.append(pl.BlockSpec((tile_m, f), lambda i, k: (i, 0)))
        inputs.append(ori)
        bytes_accessed += ori.size * 4

    return pl.pallas_call(
        _make_aggregate_kernel(float(residual)),
        out_shape=jax.ShapeDtypeStruct((n, f), jnp.float32),
        grid=grid,
        in_specs=in_specs,
        out_specs=pl.BlockSpec((tile_m, f), lambda i, k: (i, 0)),
        scratch_shapes=[pltpu.VMEM((tile_m, f), jnp.float32)],
        compiler_params=pltpu.CompilerParams(
            dimension_semantics=("parallel", "arbitrary"),
            vmem_limit_bytes=VMEM_LIMIT,
        ),
        cost_estimate=pl.CostEstimate(
            flops=2 * n * n * f,
            transcendentals=0,
            bytes_accessed=bytes_accessed,
        ),
    )(*inputs)


def gcn_conv(a_hat_bf16, x, w, b2d, ori, residual, tile_m, tile_k):
    xw = linear_bf16(x, w, tile_m)                    # computed once per layer
    return aggregate(a_hat_bf16, xw, b2d, ori, residual, tile_m, tile_k)


# ----------------------------- glue (plain JAX) -----------------------------
def build_normalized_adjacency(edge_index, num_nodes):
    """Dense A_hat = D^-1/2 (A + I) D^-1/2 (PyG-style add_remaining_self_loops)."""
    src, dst = edge_index[0], edge_index[1]
    a = jnp.zeros((num_nodes, num_nodes), jnp.float32)
    a = a.at[dst, src].add(1.0)
    # add a self loop only where one is not already present
    diag = jnp.diagonal(a)
    a = a + jnp.diag(jnp.where(diag > 0.0, 0.0, 1.0))
    deg = jnp.sum(a, axis=1)
    dinv = jnp.where(deg > 0.0, 1.0 / jnp.sqrt(deg), 0.0)
    return dinv[:, None] * a * dinv[None, :]


def glorot(key, shape):
    fan_in, fan_out = shape
    limit = jnp.sqrt(6.0 / (fan_in + fan_out))
    return jax.random.uniform(key, shape, jnp.float32, -limit, limit)


def init_gcn_params(key, in_feats, h_feats):
    k1, k2 = jax.random.split(key)
    return {
        "w1": glorot(k1, (in_feats, h_feats)),
        "b1": jnp.zeros((h_feats,), jnp.float32),
        "w2": glorot(k2, (h_feats, h_feats)),
        "b2": jnp.zeros((h_feats,), jnp.float32),
    }


def gcn_forward(params, in_feat, edge_index, *, prop_step=2, residual=0.0):
    """Mirrors GCN.forward: conv1, then (prop_step-1)x conv2, each + residual*ori."""
    n, fin = in_feat.shape
    h_feats = params["w1"].shape[1]
    if residual != 0.0:
        assert fin == h_feats, "residual path requires in_feats == h_feats"

    tile = _node_tile(n)
    n_pad = _round_up(n, tile)
    fin_pad = _round_up(fin, LANE)
    h_pad = _round_up(h_feats, LANE)

    a_hat = build_normalized_adjacency(edge_index, n)
    a_hat_p = _pad2d(a_hat, n_pad, n_pad).astype(jnp.bfloat16)

    x_p = _pad2d(in_feat.astype(jnp.float32), n_pad, fin_pad)
    w1_p = _pad2d(params["w1"], fin_pad, h_pad)
    w2_p = _pad2d(params["w2"], h_pad, h_pad)
    b1_p = jnp.pad(params["b1"], (0, h_pad - h_feats)).reshape(1, h_pad)
    b2_p = jnp.pad(params["b2"], (0, h_pad - h_feats)).reshape(1, h_pad)

    ori_p = None
    if residual != 0.0:
        ori_p = _pad2d(in_feat.astype(jnp.float32), n_pad, h_pad)

    h = gcn_conv(a_hat_p, x_p, w1_p, b1_p, ori_p, residual, tile, tile)
    for _ in range(1, prop_step):
        h = gcn_conv(a_hat_p, h, w2_p, b2_p, ori_p, residual, tile, tile)
    return h[:n, :h_feats]


# pure-JAX reference (mirrors the kernel's bf16 casts of A_hat and XW)
def gcn_forward_ref(params, in_feat, edge_index, *, prop_step=2, residual=0.0):
    a_hat = build_normalized_adjacency(edge_index, in_feat.shape[0])
    a_bf = a_hat.astype(jnp.bfloat16).astype(jnp.float32)
    ori = in_feat

    def layer(x, w, b):
        xw = jnp.dot(x, w).astype(jnp.bfloat16).astype(jnp.float32)
        return jnp.dot(a_bf, xw) + b + residual * ori

    h = layer(in_feat, params["w1"], params["b1"])
    for _ in range(1, prop_step):
        h = layer(h, params["w2"], params["b2"])
    return h


if __name__ == "__main__":
    key = jax.random.PRNGKey(0)
    k_feat, k_param = jax.random.split(key)

    # Small synthetic graph: 16 nodes, in_feats == h_feats == 32.
    num_nodes, in_feats, h_feats = 16, 32, 32
    in_feat = jax.random.normal(k_feat, (num_nodes, in_feats), jnp.float32)

    # Undirected ring graph, both directions listed.
    src = jnp.arange(num_nodes, dtype=jnp.int32)
    dst = (src + 1) % num_nodes
    edge_index = jnp.stack(
        [jnp.concatenate([src, dst]), jnp.concatenate([dst, src])], axis=0)

    params = init_gcn_params(k_param, in_feats, h_feats)

    # Module defaults: prop_step=2, residual=0 (residual stream dropped at trace time).
    out = gcn_forward(params, in_feat, edge_index, prop_step=2, residual=0.0)
    out = jax.block_until_ready(out)
    ref = gcn_forward_ref(params, in_feat, edge_index, prop_step=2, residual=0.0)
    assert out.shape == (num_nodes, h_feats)
    assert jnp.allclose(out, ref, atol=2e-2, rtol=2e-2)

    # Also exercise the residual path and deeper propagation.
    out_r = gcn_forward(params, in_feat, edge_index, prop_step=3, residual=0.5)
    out_r = jax.block_until_ready(out_r)
    ref_r = gcn_forward_ref(params, in_feat, edge_index, prop_step=3, residual=0.5)
    assert out_r.shape == (num_nodes, h_feats)
    assert jnp.allclose(out_r, ref_r, atol=2e-2, rtol=2e-2)

    print("KERNEL_OK")
</pallas_src>

<mosaic_0001>
module attributes {stable_mosaic.version = 11 : i64} {
  func.func @_linear_kernel(%arg0: i32, %arg1: memref<128x128xf32, #tpu.memory_space<vmem>>, %arg2: memref<128x128xf32, #tpu.memory_space<vmem>>, %arg3: memref<128x128xbf16, #tpu.memory_space<vmem>>) attributes {dimension_semantics = [#tpu.dimension_semantics<parallel>], iteration_bounds = array<i64: 1>, scalar_prefetch = 0 : i64, scratch_operands = 0 : i64, tpu.core_type = #tpu.core_type<tc>, window_params = [{transform_indices = @transform_0, window_bounds = array<i64: 128, 128>}, {pipeline_mode = #tpu.pipeline_mode<synchronous>, transform_indices = @transform_1, window_bounds = array<i64: 128, 128>}, {transform_indices = @transform_2, window_bounds = array<i64: 128, 128>}]} {
    %c0 = arith.constant 0 : index
    %c0_0 = arith.constant 0 : index
    %0 = vector.load %arg1[%c0, %c0_0] : memref<128x128xf32, #tpu.memory_space<vmem>>, vector<128x128xf32>
    %c0_1 = arith.constant 0 : index
    %c0_2 = arith.constant 0 : index
    %1 = vector.load %arg2[%c0_1, %c0_2] : memref<128x128xf32, #tpu.memory_space<vmem>>, vector<128x128xf32>
    %cst = arith.constant dense<0.000000e+00> : vector<128x128xf32>
    %2 = tpu.matmul %0, %1, %cst {dimension_numbers = #tpu.dot_dimension_numbers<[1], [0], [0], [1], [0, 0, 1, 1], [], []>} : vector<128x128xf32>, vector<128x128xf32>, vector<128x128xf32> -> vector<128x128xf32>
    %3 = arith.truncf %2 : vector<128x128xf32> to vector<128x128xbf16>
    %c0_3 = arith.constant 0 : index
    %c0_4 = arith.constant 0 : index
    %4 = vector.load %arg3[%c0_3, %c0_4] : memref<128x128xbf16, #tpu.memory_space<vmem>>, vector<128x128xbf16>
    tpu.vector_store %arg3[%c0_3, %c0_4], %3 {strides = array<i32>} : memref<128x128xbf16, #tpu.memory_space<vmem>>, vector<128x128xbf16>,
    return
  }
  func.func @transform_0(%arg0: i32) -> (i32, i32) {
    %c0_i32 = arith.constant 0 : i32
    %c0_i32_0 = arith.constant 0 : i32
    return %arg0, %c0_i32 : i32, i32
  }
  func.func @transform_1(%arg0: i32) -> (i32, i32) {
    %c0_i32 = arith.constant 0 : i32
    %c0_i32_0 = arith.constant 0 : i32
    %c0_i32_1 = arith.constant 0 : i32
    return %c0_i32, %c0_i32_0 : i32, i32
  }
  func.func @transform_2(%arg0: i32) -> (i32, i32) {
    %c0_i32 = arith.constant 0 : i32
    %c0_i32_0 = arith.constant 0 : i32
    return %arg0, %c0_i32 : i32, i32
  }
}

</mosaic_0001>

<llo_original>
// kernel: tpu_custom_call.1
$region0: #{tpu_custom_call.1}
  #allocation0 [shape = 'u32[]', space=smem, size = 0x4, offset = 0x4, fixed_abs, tag = 'smem constant byte address 0x4 - core index']
  #allocation1 [shape = 'u32[144,128]{1,0:T(1,128)}', space=vmem, size = 0x12000, scoped, tag = 'internal scratch']
  %s0 = inlined_call_operand.hbm [shape: f32[128,128], index: 0, kind: input, shape index: {}]
  %s1 = inlined_call_operand.hbm [shape: f32[128,128], index: 1, kind: input, shape index: {}]
  %s2 = inlined_call_operand.hbm [shape: bf16[128,128], index: 2, kind: output, shape index: {}]
  %s3 = sld [smem:[#allocation0]]
  $region26: #{tpu_custom_call.1} parent=0
    _
  %s5 = ssub.s32 1, %s3
  %s6 = scalar_select 0, %s5, %s3
  $region1: #{tpu_custom_call.1} parent=0
    #allocation2 [shape = 'u8[65536]{0}', space=vmem, size = 0x10000, scoped, tag = 'input window, operand 0, single buffered']
    #allocation3 [shape = 's32[1]{0}', space=sflag, size = 0x4, scoped, tag = 'scoped memory for tpu_custom_call.1']
    #allocation4 [shape = 's32[1]{0}', space=sflag, size = 0x4, scoped, tag = 'scoped memory for tpu_custom_call.1']
    #allocation5 [shape = 'u8[65536]{0}', space=vmem, size = 0x10000, scoped, tag = 'input window, operand 1, single buffered']
    #allocation6 [shape = 's32[1]{0}', space=sflag, size = 0x4, scoped, tag = 'scoped memory for tpu_custom_call.1']
    #allocation7 [shape = 'u8[32768]{0}', space=vmem, size = 0x8000, scoped, tag = 'output window, operand 0, single buffered']
    %7 = vsyncpa [#allocation3], 0
    %8 = vsyncpa [#allocation6], 0
    %9 = vsyncpa [#allocation4], 0
    // Predicated region
    $region2: #{tpu_custom_call.1} parent=1 // pred_check
      _
    $region3: #{tpu_custom_call.1} parent=1 // pred_check_branch
      %11 = sbr.rel (0) target = $region5
    $region4: #{tpu_custom_call.1} parent=1 // pred_region
      %s13 = ssub.s32 2048, 2048
      %14 = vsyncadd [#allocation3], %s13
      %s15 = sshll.u32 [#allocation2], 4
      %s16 = int_to_ptr.vmem [resolvable:$true] %s15
      %21 = dma.hbm_to_vmem [thread:$0]  %s0, 2048, %s16, [#allocation3], 128, 128, 8
    $region5: #{tpu_custom_call.1} parent=1 // pred_fallthru
      _
    // Predicated region
    $region6: #{tpu_custom_call.1} parent=1 // pred_check
      _
    $region7: #{tpu_custom_call.1} parent=1 // pred_check_branch
      %23 = sbr.rel (0) target = $region9
    $region8: #{tpu_custom_call.1} parent=1 // pred_region
      %s25 = ssub.s32 2048, 2048
      %26 = vsyncadd [#allocation6], %s25
      %s27 = sshll.u32 [#allocation5], 4
      %s28 = int_to_ptr.vmem [resolvable:$true] %s27
      %33 = dma.hbm_to_vmem [thread:$0]  %s1, 2048, %s28, [#allocation6], 128, 128, 8
    $region9: #{tpu_custom_call.1} parent=1 // pred_fallthru
      _
    // Predicated region
    $region10: #{tpu_custom_call.1} parent=1 // pred_check
      _
    $region11: #{tpu_custom_call.1} parent=1 // pred_check_branch
      %35 = sbr.rel (0) target = $region13
    $region12: #{tpu_custom_call.1} parent=1 // pred_region
      %36 = dma.done [#allocation3], 2048
    $region13: #{tpu_custom_call.1} parent=1 // pred_fallthru
      _
    // Predicated region
    $region14: #{tpu_custom_call.1} parent=1 // pred_check
      _
    $region15: #{tpu_custom_call.1} parent=1 // pred_check_branch
      %38 = sbr.rel (0) target = $region17
    $region16: #{tpu_custom_call.1} parent=1 // pred_region
      %39 = dma.done [#allocation6], 2048
    $region17: #{tpu_custom_call.1} parent=1 // pred_fallthru
      _
    %v40 = vld [vmem:[#allocation2] sm:$0xff]
    %v41 = vld [vmem:[#allocation2 + $0x8] sm:$0xff]
    %v42 = vld [vmem:[#allocation2 + $0x10] sm:$0xff]
    %v43 = vld [vmem:[#allocation2 + $0x18] sm:$0xff]
    %v44 = vld [vmem:[#allocation2 + $0x20] sm:$0xff]
    %v45 = vld [vmem:[#allocation2 + $0x28] sm:$0xff]
    %v46 = vld [vmem:[#allocation2 + $0x30] sm:$0xff]
    %v47 = vld [vmem:[#allocation2 + $0x38] sm:$0xff]
    %v48 = vld [vmem:[#allocation2 + $0x40] sm:$0xff]
    %v49 = vld [vmem:[#allocation2 + $0x48] sm:$0xff]
    %v50 = vld [vmem:[#allocation2 + $0x50] sm:$0xff]
    %v51 = vld [vmem:[#allocation2 + $0x58] sm:$0xff]
    %v52 = vld [vmem:[#allocation2 + $0x60] sm:$0xff]
    %v53 = vld [vmem:[#allocation2 + $0x68] sm:$0xff]
    %v54 = vld [vmem:[#allocation2 + $0x70] sm:$0xff]
    %v55 = vld [vmem:[#allocation2 + $0x78] sm:$0xff]
    %v56 = vld [vmem:[#allocation5] sm:$0xff]
    %v57 = vld [vmem:[#allocation5 + $0x8] sm:$0xff]
    %v58 = vld [vmem:[#allocation5 + $0x10] sm:$0xff]
    %v59 = vld [vmem:[#allocation5 + $0x18] sm:$0xff]
    %v60 = vld [vmem:[#allocation5 + $0x20] sm:$0xff]
    %v61 = vld [vmem:[#allocation5 + $0x28] sm:$0xff]
    %v62 = vld [vmem:[#allocation5 + $0x30] sm:$0xff]
    %v63 = vld [vmem:[#allocation5 + $0x38] sm:$0xff]
    %v64 = vld [vmem:[#allocation5 + $0x40] sm:$0xff]
    %v65 = vld [vmem:[#allocation5 + $0x48] sm:$0xff]
    %v66 = vld [vmem:[#allocation5 + $0x50] sm:$0xff]
    %v67 = vld [vmem:[#allocation5 + $0x58] sm:$0xff]
    %v68 = vld [vmem:[#allocation5 + $0x60] sm:$0xff]
    %v69 = vld [vmem:[#allocation5 + $0x68] sm:$0xff]
    %v70 = vld [vmem:[#allocation5 + $0x70] sm:$0xff]
    %v71 = vld [vmem:[#allocation5 + $0x78] sm:$0xff]
    %72 = vmatprep.subr.mxu0 0.0
    %73 = vmatpush1.msra.mxu0 %v71
    %74 = vmatprep.subr.mxu0 0.0
    %75 = vmatpush1.msra.mxu0 %v70
    %76 = vmatprep.subr.mxu0 0.0
    %77 = vmatpush1.msra.mxu0 %v69
    %78 = vmatprep.subr.mxu0 0.0
    %79 = vmatpush1.msra.mxu0 %v68
    %80 = vmatprep.subr.mxu0 0.0
    %81 = vmatpush1.msra.mxu0 %v67
    %82 = vmatprep.subr.mxu0 0.0
    %83 = vmatpush1.msra.mxu0 %v66
    %84 = vmatprep.subr.mxu0 0.0
    %85 = vmatpush1.msra.mxu0 %v65
    %86 = vmatprep.subr.mxu0 0.0
    %87 = vmatpush1.msra.mxu0 %v64
    %88 = vmatprep.subr.mxu0 0.0
    %89 = vmatpush1.msra.mxu0 %v63
    %90 = vmatprep.subr.mxu0 0.0
    %91 = vmatpush1.msra.mxu0 %v62
    %92 = vmatprep.subr.mxu0 0.0
    %93 = vmatpush1.msra.mxu0 %v61
    %94 = vmatprep.subr.mxu0 0.0
    %95 = vmatpush1.msra.mxu0 %v60
    %96 = vmatprep.subr.mxu0 0.0
    %97 = vmatpush1.msra.mxu0 %v59
    %98 = vmatprep.subr.mxu0 0.0
    %99 = vmatpush1.msra.mxu0 %v58
    %100 = vmatprep.subr.mxu0 0.0
    %101 = vmatpush1.msra.mxu0 %v57
    %102 = vmatprep.subr.mxu0 0.0
    %103 = vmatpush1.msra.mxu0 %v56
    %104 = vmatprep.subr.mxu0 0.0
    %105 = vmatpush2.msra.mxu0 0.0
    %106 = vmatprep.subr.mxu0 0.0
    %107 = vmatpush2.msra.mxu0 0.0
    %108 = vmatprep.subr.mxu0 0.0
    %109 = vmatpush2.msra.mxu0 0.0
    %110 = vmatprep.subr.mxu0 0.0
    %111 = vmatpush2.msra.mxu0 0.0
    %112 = vmatprep.subr.mxu0 0.0
    %113 = vmatpush2.msra.mxu0 0.0
    %114 = vmatprep.subr.mxu0 0.0
    %115 = vmatpush2.msra.mxu0 0.0
    %116 = vmatprep.subr.mxu0 0.0
    %117 = vmatpush2.msra.mxu0 0.0
    %118 = vmatprep.subr.mxu0 0.0
    %119 = vmatpush2.msra.mxu0 0.0
    %120 = vmatprep.subr.mxu0 0.0
    %121 = vmatpush2.msra.mxu0 0.0
    %122 = vmatprep.subr.mxu0 0.0
    %123 = vmatpush2.msra.mxu0 0.0
    %124 = vmatprep.subr.mxu0 0.0
    %125 = vmatpush2.msra.mxu0 0.0
    %126 = vmatprep.subr.mxu0 0.0
    %127 = vmatpush2.msra.mxu0 0.0
    %128 = vmatprep.subr.mxu0 0.0
    %129 = vmatpush2.msra.mxu0 0.0
    %130 = vmatprep.subr.mxu0 0.0
    %131 = vmatpush2.msra.mxu0 0.0
    %132 = vmatprep.subr.mxu0 0.0
    %133 = vmatpush2.msra.mxu0 0.0
    %134 = vmatprep.subr.mxu0 0.0
    %135 = vmatpush2.msra.mxu0 0.0
    %136 = vmatprep.mubr.f32.mxu0 0.0
    %137 = vmatmul.mubr.f32.gmra.mxu0 %v40
    %v138 = vpop.f32.mrf.mxu0
    %v139 = vadd.f32 0.0, %v138
    %v140 = vpop.f32.mrf.mxu0
    %141 = vmatprep.mubr.f32.mxu0 0.0
    %142 = vmatmul.mubr.f32.gmra.mxu0 %v41
    %v143 = vpop.f32.mrf.mxu0
    %v144 = vadd.f32 0.0, %v143
    %v145 = vpop.f32.mrf.mxu0
    %146 = vmatprep.mubr.f32.mxu0 0.0
    %147 = vmatmul.mubr.f32.gmra.mxu0 %v42
    %v148 = vpop.f32.mrf.mxu0
    %v149 = vadd.f32 0.0, %v148
    %v150 = vpop.f32.mrf.mxu0
    %151 = vmatprep.mubr.f32.mxu0 0.0
    %152 = vmatmul.mubr.f32.gmra.mxu0 %v43
    %v153 = vpop.f32.mrf.mxu0
    %v154 = vadd.f32 0.0, %v153
    %v155 = vpop.f32.mrf.mxu0
    %156 = vmatprep.mubr.f32.mxu0 0.0
    %157 = vmatmul.mubr.f32.gmra.mxu0 %v44
    %v158 = vpop.f32.mrf.mxu0
    %v159 = vadd.f32 0.0, %v158
    %v160 = vpop.f32.mrf.mxu0
    %161 = vmatprep.mubr.f32.mxu0 0.0
    %162 = vmatmul.mubr.f32.gmra.mxu0 %v45
    %v163 = vpop.f32.mrf.mxu0
    %v164 = vadd.f32 0.0, %v163
    %v165 = vpop.f32.mrf.mxu0
    %166 = vmatprep.mubr.f32.mxu0 0.0
    %167 = vmatmul.mubr.f32.gmra.mxu0 %v46
    %v168 = vpop.f32.mrf.mxu0
    %v169 = vadd.f32 0.0, %v168
    %v170 = vpop.f32.mrf.mxu0
    %171 = vmatprep.mubr.f32.mxu0 0.0
    %172 = vmatmul.mubr.f32.gmra.mxu0 %v47
    %v173 = vpop.f32.mrf.mxu0
    %v174 = vadd.f32 0.0, %v173
    %v175 = vpop.f32.mrf.mxu0
    %176 = vmatprep.mubr.f32.mxu0 0.0
    %177 = vmatmul.mubr.f32.gmra.mxu0 %v48
    %v178 = vpop.f32.mrf.mxu0
    %v179 = vadd.f32 0.0, %v178
    %v180 = vpop.f32.mrf.mxu0
    %181 = vmatprep.mubr.f32.mxu0 0.0
    %182 = vmatmul.mubr.f32.gmra.mxu0 %v49
    %v183 = vpop.f32.mrf.mxu0
    %v184 = vadd.f32 0.0, %v183
    %v185 = vpop.f32.mrf.mxu0
    %186 = vmatprep.mubr.f32.mxu0 0.0
    %187 = vmatmul.mubr.f32.gmra.mxu0 %v50
    %v188 = vpop.f32.mrf.mxu0
    %v189 = vadd.f32 0.0, %v188
    %v190 = vpop.f32.mrf.mxu0
    %191 = vmatprep.mubr.f32.mxu0 0.0
    %192 = vmatmul.mubr.f32.gmra.mxu0 %v51
    %v193 = vpop.f32.mrf.mxu0
    %v194 = vadd.f32 0.0, %v193
    %v195 = vpop.f32.mrf.mxu0
    %196 = vmatprep.mubr.f32.mxu0 0.0
    %197 = vmatmul.mubr.f32.gmra.mxu0 %v52
    %v198 = vpop.f32.mrf.mxu0
    %v199 = vadd.f32 0.0, %v198
    %v200 = vpop.f32.mrf.mxu0
    %201 = vmatprep.mubr.f32.mxu0 0.0
    %202 = vmatmul.mubr.f32.gmra.mxu0 %v53
    %v203 = vpop.f32.mrf.mxu0
    %v204 = vadd.f32 0.0, %v203
    %v205 = vpop.f32.mrf.mxu0
    %206 = vmatprep.mubr.f32.mxu0 0.0
    %207 = vmatmul.mubr.f32.gmra.mxu0 %v54
    %v208 = vpop.f32.mrf.mxu0
    %v209 = vadd.f32 0.0, %v208
    %v210 = vpop.f32.mrf.mxu0
    %211 = vmatprep.mubr.f32.mxu0 0.0
    %212 = vmatmul.mubr.f32.gmra.mxu0 %v55
    %v213 = vpop.f32.mrf.mxu0
    %v214 = vadd.f32 0.0, %v213
    %v215 = vpop.f32.mrf.mxu0
    %216 = vdwg.mxu0
    %v217 = vpack.c.bf16 %v144, %v139
    %v218 = vpack.c.bf16 %v154, %v149
    %v219 = vpack.c.bf16 %v164, %v159
    %v220 = vpack.c.bf16 %v174, %v169
    %v221 = vpack.c.bf16 %v184, %v179
    %v222 = vpack.c.bf16 %v194, %v189
    %v223 = vpack.c.bf16 %v204, %v199
    %v224 = vpack.c.bf16 %v214, %v209
    %v233 = vunpack.c.l.b16 %v217
    %v234 = vunpack.c.h.b16 %v217
    %v235 = vunpack.c.l.b16 %v218
    %v236 = vunpack.c.h.b16 %v218
    %v237 = vunpack.c.l.b16 %v219
    %v238 = vunpack.c.h.b16 %v219
    %v239 = vunpack.c.l.b16 %v220
    %v240 = vunpack.c.h.b16 %v220
    %v241 = vunpack.c.l.b16 %v221
    %v242 = vunpack.c.h.b16 %v221
    %v243 = vunpack.c.l.b16 %v222
    %v244 = vunpack.c.h.b16 %v222
    %v245 = vunpack.c.l.b16 %v223
    %v246 = vunpack.c.h.b16 %v223
    %v247 = vunpack.c.l.b16 %v224
    %v248 = vunpack.c.h.b16 %v224
    %v249 = vpack.c.b16 %v233, %v233
    %v250 = vpack.c.b16 %v234, %v234
    %v251 = vpack.c.b16 %v235, %v235
    %v252 = vpack.c.b16 %v236, %v236
    %v253 = vpack.c.b16 %v237, %v237
    %v254 = vpack.c.b16 %v238, %v238
    %v255 = vpack.c.b16 %v239, %v239
    %v256 = vpack.c.b16 %v240, %v240
    %v257 = vpack.c.b16 %v241, %v241
    %v258 = vpack.c.b16 %v242, %v242
    %v259 = vpack.c.b16 %v243, %v243
    %v260 = vpack.c.b16 %v244, %v244
    %v261 = vpack.c.b16 %v245, %v245
    %v262 = vpack.c.b16 %v246, %v246
    %v263 = vpack.c.b16 %v247, %v247
    %v264 = vpack.c.b16 %v248, %v248
    %281 = vst [vmem:[#allocation7] sm:$0xf] %v249
    %282 = vst [vmem:[#allocation7 + $0x4] sm:$0xf] %v250
    %283 = vst [vmem:[#allocation7 + $0x8] sm:$0xf] %v251
    %284 = vst [vmem:[#allocation7 + $0xc] sm:$0xf] %v252
    %285 = vst [vmem:[#allocation7 + $0x10] sm:$0xf] %v253
    %286 = vst [vmem:[#allocation7 + $0x14] sm:$0xf] %v254
    %287 = vst [vmem:[#allocation7 + $0x18] sm:$0xf] %v255
    %288 = vst [vmem:[#allocation7 + $0x1c] sm:$0xf] %v256
    %289 = vst [vmem:[#allocation7 + $0x20] sm:$0xf] %v257
    %290 = vst [vmem:[#allocation7 + $0x24] sm:$0xf] %v258
    %291 = vst [vmem:[#allocation7 + $0x28] sm:$0xf] %v259
    %292 = vst [vmem:[#allocation7 + $0x2c] sm:$0xf] %v260
    %293 = vst [vmem:[#allocation7 + $0x30] sm:$0xf] %v261
    %294 = vst [vmem:[#allocation7 + $0x34] sm:$0xf] %v262
    %295 = vst [vmem:[#allocation7 + $0x38] sm:$0xf] %v263
    %296 = vst [vmem:[#allocation7 + $0x3c] sm:$0xf] %v264
    // Predicated region
    $region18: #{tpu_custom_call.1} parent=1 // pred_check
      _
    $region19: #{tpu_custom_call.1} parent=1 // pred_check_branch
      %298 = sbr.rel (0) target = $region21
    $region20: #{tpu_custom_call.1} parent=1 // pred_region
      %s300 = ssub.s32 1024, 1024
      %301 = vsyncadd [#allocation4], %s300
      %s302 = sshll.u32 [#allocation7], 4
      %s303 = int_to_ptr.vmem [resolvable:$true] %s302
      %308 = dma.vmem_to_hbm [thread:$0]  %s303, 1024, %s2, [#allocation4], 64, 64, 4
    $region21: #{tpu_custom_call.1} parent=1 // pred_fallthru
      _
    // Predicated region
    $region22: #{tpu_custom_call.1} parent=1 // pred_check
      _
    $region23: #{tpu_custom_call.1} parent=1 // pred_check_branch
      %310 = sbr.rel (0) target = $region25
    $region24: #{tpu_custom_call.1} parent=1 // pred_region
      %311 = dma.done [#allocation4], 1024
    $region25: #{tpu_custom_call.1} parent=1 // pred_fallthru
      _
    %312 = vsyncpa [#allocation3], 1
    %313 = vsyncpa [#allocation6], 1
    %314 = vsyncpa [#allocation4], 1

</llo_original>
